<compile_context>
chip_gen: v7x
topology: tpu7x:2x2x1
jax: 0.10.0
libtpu: 0.0.40
codegen_flags: <defaults>
</compile_context>

<pallas_src>
from functools import partial

import jax
import jax.numpy as jnp
from jax.experimental import pallas as pl
from jax.experimental.pallas import tpu as pltpu

# Small, self-consistent shapes (module's originals: n_embed=384, T<=256).
N_EMBED = 32
NUM_HEADS = 4
HEAD_SIZE = N_EMBED // NUM_HEADS
T = 16
B = 2


def fused_mha_kernel(x_ref, wqkv_ref, wp_ref, bp_ref, o_ref, *, num_heads):
    """One batch element: all heads + causal softmax + output projection.

    x_ref    : (1, T, C)  f32
    wqkv_ref : (3, C, C)  bf16   packed [Wq | Wk | Wv], each (C, H*hs)
    wp_ref   : (C, C)     bf16   proj.weight.T
    bp_ref   : (1, C)     f32    proj.bias
    o_ref    : (1, T, C)
    """
    Tq = x_ref.shape[1]
    C = x_ref.shape[2]
    H = num_heads
    hs = C // H

    x = x_ref[0]                              # (T, C) f32
    xb = x.astype(jnp.bfloat16)

    # Q/K/V for ALL heads at once: three (T, C)x(C, C) MXU matmuls against the
    # pre-packed weights (single operand, fetched once across the grid).
    q = jnp.dot(xb, wqkv_ref[0], preferred_element_type=jnp.float32)   # (T, C)
    k = jnp.dot(xb, wqkv_ref[1], preferred_element_type=jnp.float32)   # (T, C)
    v = jnp.dot(xb, wqkv_ref[2], preferred_element_type=jnp.float32)   # (T, C)

    # PyTorch scales by C = n_embed (not head_size) -- keep that semantics.
    scale = C ** (-0.5)

    # Causal mask (tril), shared by all heads.
    row = jax.lax.broadcasted_iota(jnp.int32, (Tq, Tq), 0)
    col = jax.lax.broadcasted_iota(jnp.int32, (Tq, Tq), 1)
    causal = col <= row

    head_outs = []
    for h in range(H):                        # static, fully unrolled (H is small)
        qh = q[:, h * hs:(h + 1) * hs].astype(jnp.bfloat16)   # (T, hs)
        kh = k[:, h * hs:(h + 1) * hs].astype(jnp.bfloat16)   # (T, hs)
        vh = v[:, h * hs:(h + 1) * hs].astype(jnp.bfloat16)   # (T, hs)

        # scores = q @ k^T without materializing k.T: contract hs of both.
        s = jax.lax.dot_general(
            qh, kh, (((1,), (1,)), ((), ())),
            preferred_element_type=jnp.float32) * scale       # (T, T) f32
        s = jnp.where(causal, s, -jnp.inf)

        # f32 softmax (max-subtracted); reciprocal on the EUP.
        m = jnp.max(s, axis=-1, keepdims=True)
        p = jnp.exp(s - m)
        inv = pl.reciprocal(jnp.sum(p, axis=-1, keepdims=True), approx=True)
        probs = (p * inv).astype(jnp.bfloat16)
        # (attention dropout would go here in training mode)

        head_outs.append(
            jnp.dot(probs, vh, preferred_element_type=jnp.float32))      # (T, hs)

    cat = jnp.concatenate(head_outs, axis=-1).astype(jnp.bfloat16)        # (T, C)

    # Fused output projection: y = cat @ W_proj^T + b  (wp is pre-transposed).
    y = jnp.dot(cat, wp_ref[...], preferred_element_type=jnp.float32) \
        + bp_ref[...].astype(jnp.float32)
    # (output dropout would go here in training mode)
    o_ref[0] = y.astype(o_ref.dtype)


def multi_head_attention(x, wq, wk, wv, wp, bp):
    """x: (B, T, C); wq/wk/wv: (H, C, hs); wp: (C, C) [= proj.weight.T]; bp: (1, C)."""
    Bx, Tx, C = x.shape
    H, _, hs = wq.shape

    # Pack per-head projections into one operand: (3, C, H*hs) = (3, C, C).
    # Column block h of each (C, C) matrix is head h's weight, so
    # (x @ packed)[:, h*hs:(h+1)*hs] == x @ w[h].  Cast to bf16 for MXU / DMA.
    def pack(w):
        return jnp.transpose(w, (1, 0, 2)).reshape(C, H * hs)

    wqkv = jnp.stack([pack(wq), pack(wk), pack(wv)], axis=0).astype(jnp.bfloat16)
    wp_b = wp.astype(jnp.bfloat16)

    return pl.pallas_call(
        partial(fused_mha_kernel, num_heads=H),
        out_shape=jax.ShapeDtypeStruct((Bx, Tx, C), x.dtype),
        grid=(Bx,),
        in_specs=[
            pl.BlockSpec((1, Tx, C), lambda b: (b, 0, 0)),
            pl.BlockSpec((3, C, H * hs), lambda b: (0, 0, 0)),  # constant -> 1 DMA
            pl.BlockSpec((C, C), lambda b: (0, 0)),             # constant -> 1 DMA
            pl.BlockSpec((1, C), lambda b: (0, 0)),             # constant -> 1 DMA
        ],
        out_specs=pl.BlockSpec((1, Tx, C), lambda b: (b, 0, 0)),
        compiler_params=pltpu.CompilerParams(
            dimension_semantics=("parallel",)),  # lets v7x use both TensorCores
    )(x, wqkv, wp_b, bp)


def reference(x, wq, wk, wv, wp, bp):
    """Pure-JAX f32 replica of the PyTorch forward (eval mode)."""
    Bx, Tx, C = x.shape
    outs = []
    for h in range(wq.shape[0]):
        q = x @ wq[h]
        k = x @ wk[h]
        v = x @ wv[h]
        w = (q @ jnp.swapaxes(k, -1, -2)) * (C ** -0.5)
        tril = jnp.tril(jnp.ones((Tx, Tx)))
        w = jnp.where(tril == 0, -jnp.inf, w)
        w = jax.nn.softmax(w, axis=-1)
        outs.append(w @ v)
    cat = jnp.concatenate(outs, axis=-1)
    return cat @ wp + bp.reshape(-1)


if __name__ == "__main__":
    key = jax.random.PRNGKey(0)
    kx, kq, kk, kv, kw, kb = jax.random.split(key, 6)

    x = jax.random.normal(kx, (B, T, N_EMBED), dtype=jnp.float32)

    # Deterministic parameter init mimicking nn.Linear: U(-1/sqrt(fan_in), 1/sqrt(fan_in)).
    bound = 1.0 / (N_EMBED ** 0.5)
    wq = jax.random.uniform(kq, (NUM_HEADS, N_EMBED, HEAD_SIZE),
                            minval=-bound, maxval=bound, dtype=jnp.float32)
    wk = jax.random.uniform(kk, (NUM_HEADS, N_EMBED, HEAD_SIZE),
                            minval=-bound, maxval=bound, dtype=jnp.float32)
    wv = jax.random.uniform(kv, (NUM_HEADS, N_EMBED, HEAD_SIZE),
                            minval=-bound, maxval=bound, dtype=jnp.float32)
    wp = jax.random.uniform(kw, (N_EMBED, N_EMBED),
                            minval=-bound, maxval=bound, dtype=jnp.float32)  # proj.weight.T
    bp = jax.random.uniform(kb, (1, N_EMBED),
                            minval=-bound, maxval=bound, dtype=jnp.float32)  # proj.bias

    out = multi_head_attention(x, wq, wk, wv, wp, bp)
    out = jax.block_until_ready(out)

    ref = reference(x, wq, wk, wv, wp, bp)
    assert out.shape == (B, T, N_EMBED)
    # bf16 MXU operands (f32 accumulation) -> relax tolerance vs. the pure-f32 reference.
    assert jnp.allclose(out, ref, atol=2e-2, rtol=2e-2), "mismatch vs pure-JAX reference"

    print("KERNEL_OK")
</pallas_src>

<mosaic_0001>
module attributes {stable_mosaic.version = 11 : i64} {
  func.func @fused_mha_kernel(%arg0: i32, %arg1: memref<1x16x32xf32, #tpu.memory_space<vmem>>, %arg2: memref<3x32x32xbf16, #tpu.memory_space<vmem>>, %arg3: memref<32x32xbf16, #tpu.memory_space<vmem>>, %arg4: memref<1x32xf32, #tpu.memory_space<vmem>>, %arg5: memref<1x16x32xf32, #tpu.memory_space<vmem>>) attributes {dimension_semantics = [#tpu.dimension_semantics<parallel>], iteration_bounds = array<i64: 2>, scalar_prefetch = 0 : i64, scratch_operands = 0 : i64, tpu.core_type = #tpu.core_type<tc>, window_params = [{transform_indices = @transform_0, window_bounds = array<i64: 1, 16, 32>}, {pipeline_mode = #tpu.pipeline_mode<synchronous>, transform_indices = @transform_1, window_bounds = array<i64: 3, 32, 32>}, {pipeline_mode = #tpu.pipeline_mode<synchronous>, transform_indices = @transform_2, window_bounds = array<i64: 32, 32>}, {pipeline_mode = #tpu.pipeline_mode<synchronous>, transform_indices = @transform_3, window_bounds = array<i64: 1, 32>}, {transform_indices = @transform_4, window_bounds = array<i64: 1, 16, 32>}]} {
    %c0 = arith.constant 0 : index
    %c0_0 = arith.constant 0 : index
    %c0_1 = arith.constant 0 : index
    %0 = vector.load %arg1[%c0, %c0_0, %c0_1] : memref<1x16x32xf32, #tpu.memory_space<vmem>>, vector<1x16x32xf32>
    %1 = vector.shape_cast %0 : vector<1x16x32xf32> to vector<16x32xf32>
    %2 = arith.truncf %1 : vector<16x32xf32> to vector<16x32xbf16>
    %c0_2 = arith.constant 0 : index
    %c0_3 = arith.constant 0 : index
    %c0_4 = arith.constant 0 : index
    %3 = vector.load %arg2[%c0_2, %c0_3, %c0_4] : memref<3x32x32xbf16, #tpu.memory_space<vmem>>, vector<1x32x32xbf16>
    %4 = vector.shape_cast %3 : vector<1x32x32xbf16> to vector<32x32xbf16>
    %cst = arith.constant dense<0.000000e+00> : vector<16x32xf32>
    %5 = tpu.matmul %2, %4, %cst {dimension_numbers = #tpu.dot_dimension_numbers<[1], [0], [0], [1], [0, 0, 1, 1], [], []>} : vector<16x32xbf16>, vector<32x32xbf16>, vector<16x32xf32> -> vector<16x32xf32>
    %c1 = arith.constant 1 : index
    %c0_5 = arith.constant 0 : index
    %c0_6 = arith.constant 0 : index
    %6 = vector.load %arg2[%c1, %c0_5, %c0_6] : memref<3x32x32xbf16, #tpu.memory_space<vmem>>, vector<1x32x32xbf16>
    %7 = vector.shape_cast %6 : vector<1x32x32xbf16> to vector<32x32xbf16>
    %cst_7 = arith.constant dense<0.000000e+00> : vector<16x32xf32>
    %8 = tpu.matmul %2, %7, %cst_7 {dimension_numbers = #tpu.dot_dimension_numbers<[1], [0], [0], [1], [0, 0, 1, 1], [], []>} : vector<16x32xbf16>, vector<32x32xbf16>, vector<16x32xf32> -> vector<16x32xf32>
    %c2 = arith.constant 2 : index
    %c0_8 = arith.constant 0 : index
    %c0_9 = arith.constant 0 : index
    %9 = vector.load %arg2[%c2, %c0_8, %c0_9] : memref<3x32x32xbf16, #tpu.memory_space<vmem>>, vector<1x32x32xbf16>
    %10 = vector.shape_cast %9 : vector<1x32x32xbf16> to vector<32x32xbf16>
    %cst_10 = arith.constant dense<0.000000e+00> : vector<16x32xf32>
    %11 = tpu.matmul %2, %10, %cst_10 {dimension_numbers = #tpu.dot_dimension_numbers<[1], [0], [0], [1], [0, 0, 1, 1], [], []>} : vector<16x32xbf16>, vector<32x32xbf16>, vector<16x32xf32> -> vector<16x32xf32>
    %12 = tpu.iota {dimensions = array<i32: 0>} : vector<16x16xi32>
    %13 = tpu.iota {dimensions = array<i32: 1>} : vector<16x16xi32>
    %14 = arith.cmpi sle, %13, %12 : vector<16x16xi32>
    %15 = vector.extract_strided_slice %5 {offsets = [0, 0], sizes = [16, 8], strides = [1, 1]} : vector<16x32xf32> to vector<16x8xf32>
    %16 = arith.truncf %15 : vector<16x8xf32> to vector<16x8xbf16>
    %17 = vector.extract_strided_slice %8 {offsets = [0, 0], sizes = [16, 8], strides = [1, 1]} : vector<16x32xf32> to vector<16x8xf32>
    %18 = arith.truncf %17 : vector<16x8xf32> to vector<16x8xbf16>
    %19 = vector.extract_strided_slice %11 {offsets = [0, 0], sizes = [16, 8], strides = [1, 1]} : vector<16x32xf32> to vector<16x8xf32>
    %20 = arith.truncf %19 : vector<16x8xf32> to vector<16x8xbf16>
    %cst_11 = arith.constant dense<0.000000e+00> : vector<16x16xf32>
    %21 = tpu.matmul %16, %18, %cst_11 {dimension_numbers = #tpu.dot_dimension_numbers<[1], [1], [0], [0], [0, 0, 1, 0], [], []>} : vector<16x8xbf16>, vector<16x8xbf16>, vector<16x16xf32> -> vector<16x16xf32>
    %cst_12 = arith.constant 0.176776692 : f32
    %22 = vector.broadcast %cst_12 : f32 to vector<16x16xf32>
    %23 = arith.mulf %21, %22 : vector<16x16xf32>
    %cst_13 = arith.constant 0xFF800000 : f32
    %24 = vector.broadcast %cst_13 : f32 to vector<16x16xf32>
    %25 = arith.select %14, %23, %24 : vector<16x16xi1>, vector<16x16xf32>
    %cst_14 = arith.constant dense<0xFF800000> : vector<16xf32>
    %26 = vector.multi_reduction <maximumf>, %25, %cst_14 [1] : vector<16x16xf32> to vector<16xf32>
    %27 = vector.shape_cast %26 : vector<16xf32> to vector<16x1xf32>
    %28 = vector.broadcast %27 : vector<16x1xf32> to vector<16x16xf32>
    %29 = arith.subf %25, %28 : vector<16x16xf32>
    %30 = math.exp %29 : vector<16x16xf32>
    %cst_15 = arith.constant dense<0.000000e+00> : vector<16xf32>
    %31 = vector.multi_reduction <add>, %30, %cst_15 [1] : vector<16x16xf32> to vector<16xf32>
    %32 = vector.shape_cast %31 : vector<16xf32> to vector<16x1xf32>
    %33 = tpu.reciprocal %32 {approx = true} : vector<16x1xf32> -> vector<16x1xf32>
    %34 = vector.broadcast %33 : vector<16x1xf32> to vector<16x16xf32>
    %35 = arith.mulf %30, %34 : vector<16x16xf32>
    %36 = arith.truncf %35 : vector<16x16xf32> to vector<16x16xbf16>
    %cst_16 = arith.constant dense<0.000000e+00> : vector<16x8xf32>
    %37 = tpu.matmul %36, %20, %cst_16 {dimension_numbers = #tpu.dot_dimension_numbers<[1], [0], [0], [1], [0, 0, 1, 1], [], []>} : vector<16x16xbf16>, vector<16x8xbf16>, vector<16x8xf32> -> vector<16x8xf32>
    %38 = vector.extract_strided_slice %5 {offsets = [0, 8], sizes = [16, 8], strides = [1, 1]} : vector<16x32xf32> to vector<16x8xf32>
    %39 = arith.truncf %38 : vector<16x8xf32> to vector<16x8xbf16>
    %40 = vector.extract_strided_slice %8 {offsets = [0, 8], sizes = [16, 8], strides = [1, 1]} : vector<16x32xf32> to vector<16x8xf32>
    %41 = arith.truncf %40 : vector<16x8xf32> to vector<16x8xbf16>
    %42 = vector.extract_strided_slice %11 {offsets = [0, 8], sizes = [16, 8], strides = [1, 1]} : vector<16x32xf32> to vector<16x8xf32>
    %43 = arith.truncf %42 : vector<16x8xf32> to vector<16x8xbf16>
    %cst_17 = arith.constant dense<0.000000e+00> : vector<16x16xf32>
    %44 = tpu.matmul %39, %41, %cst_17 {dimension_numbers = #tpu.dot_dimension_numbers<[1], [1], [0], [0], [0, 0, 1, 0], [], []>} : vector<16x8xbf16>, vector<16x8xbf16>, vector<16x16xf32> -> vector<16x16xf32>
    %cst_18 = arith.constant 0.176776692 : f32
    %45 = vector.broadcast %cst_18 : f32 to vector<16x16xf32>
    %46 = arith.mulf %44, %45 : vector<16x16xf32>
    %cst_19 = arith.constant 0xFF800000 : f32
    %47 = vector.broadcast %cst_19 : f32 to vector<16x16xf32>
    %48 = arith.select %14, %46, %47 : vector<16x16xi1>, vector<16x16xf32>
    %cst_20 = arith.constant dense<0xFF800000> : vector<16xf32>
    %49 = vector.multi_reduction <maximumf>, %48, %cst_20 [1] : vector<16x16xf32> to vector<16xf32>
    %50 = vector.shape_cast %49 : vector<16xf32> to vector<16x1xf32>
    %51 = vector.broadcast %50 : vector<16x1xf32> to vector<16x16xf32>
    %52 = arith.subf %48, %51 : vector<16x16xf32>
    %53 = math.exp %52 : vector<16x16xf32>
    %cst_21 = arith.constant dense<0.000000e+00> : vector<16xf32>
    %54 = vector.multi_reduction <add>, %53, %cst_21 [1] : vector<16x16xf32> to vector<16xf32>
    %55 = vector.shape_cast %54 : vector<16xf32> to vector<16x1xf32>
    %56 = tpu.reciprocal %55 {approx = true} : vector<16x1xf32> -> vector<16x1xf32>
    %57 = vector.broadcast %56 : vector<16x1xf32> to vector<16x16xf32>
    %58 = arith.mulf %53, %57 : vector<16x16xf32>
    %59 = arith.truncf %58 : vector<16x16xf32> to vector<16x16xbf16>
    %cst_22 = arith.constant dense<0.000000e+00> : vector<16x8xf32>
    %60 = tpu.matmul %59, %43, %cst_22 {dimension_numbers = #tpu.dot_dimension_numbers<[1], [0], [0], [1], [0, 0, 1, 1], [], []>} : vector<16x16xbf16>, vector<16x8xbf16>, vector<16x8xf32> -> vector<16x8xf32>
    %61 = vector.extract_strided_slice %5 {offsets = [0, 16], sizes = [16, 8], strides = [1, 1]} : vector<16x32xf32> to vector<16x8xf32>
    %62 = arith.truncf %61 : vector<16x8xf32> to vector<16x8xbf16>
    %63 = vector.extract_strided_slice %8 {offsets = [0, 16], sizes = [16, 8], strides = [1, 1]} : vector<16x32xf32> to vector<16x8xf32>
    %64 = arith.truncf %63 : vector<16x8xf32> to vector<16x8xbf16>
    %65 = vector.extract_strided_slice %11 {offsets = [0, 16], sizes = [16, 8], strides = [1, 1]} : vector<16x32xf32> to vector<16x8xf32>
    %66 = arith.truncf %65 : vector<16x8xf32> to vector<16x8xbf16>
    %cst_23 = arith.constant dense<0.000000e+00> : vector<16x16xf32>
    %67 = tpu.matmul %62, %64, %cst_23 {dimension_numbers = #tpu.dot_dimension_numbers<[1], [1], [0], [0], [0, 0, 1, 0], [], []>} : vector<16x8xbf16>, vector<16x8xbf16>, vector<16x16xf32> -> vector<16x16xf32>
    %cst_24 = arith.constant 0.176776692 : f32
    %68 = vector.broadcast %cst_24 : f32 to vector<16x16xf32>
    %69 = arith.mulf %67, %68 : vector<16x16xf32>
    %cst_25 = arith.constant 0xFF800000 : f32
    %70 = vector.broadcast %cst_25 : f32 to vector<16x16xf32>
    %71 = arith.select %14, %69, %70 : vector<16x16xi1>, vector<16x16xf32>
    %cst_26 = arith.constant dense<0xFF800000> : vector<16xf32>
    %72 = vector.multi_reduction <maximumf>, %71, %cst_26 [1] : vector<16x16xf32> to vector<16xf32>
    %73 = vector.shape_cast %72 : vector<16xf32> to vector<16x1xf32>
    %74 = vector.broadcast %73 : vector<16x1xf32> to vector<16x16xf32>
    %75 = arith.subf %71, %74 : vector<16x16xf32>
    %76 = math.exp %75 : vector<16x16xf32>
    %cst_27 = arith.constant dense<0.000000e+00> : vector<16xf32>
    %77 = vector.multi_reduction <add>, %76, %cst_27 [1] : vector<16x16xf32> to vector<16xf32>
    %78 = vector.shape_cast %77 : vector<16xf32> to vector<16x1xf32>
    %79 = tpu.reciprocal %78 {approx = true} : vector<16x1xf32> -> vector<16x1xf32>
    %80 = vector.broadcast %79 : vector<16x1xf32> to vector<16x16xf32>
    %81 = arith.mulf %76, %80 : vector<16x16xf32>
    %82 = arith.truncf %81 : vector<16x16xf32> to vector<16x16xbf16>
    %cst_28 = arith.constant dense<0.000000e+00> : vector<16x8xf32>
    %83 = tpu.matmul %82, %66, %cst_28 {dimension_numbers = #tpu.dot_dimension_numbers<[1], [0], [0], [1], [0, 0, 1, 1], [], []>} : vector<16x16xbf16>, vector<16x8xbf16>, vector<16x8xf32> -> vector<16x8xf32>
    %84 = vector.extract_strided_slice %5 {offsets = [0, 24], sizes = [16, 8], strides = [1, 1]} : vector<16x32xf32> to vector<16x8xf32>
    %85 = arith.truncf %84 : vector<16x8xf32> to vector<16x8xbf16>
    %86 = vector.extract_strided_slice %8 {offsets = [0, 24], sizes = [16, 8], strides = [1, 1]} : vector<16x32xf32> to vector<16x8xf32>
    %87 = arith.truncf %86 : vector<16x8xf32> to vector<16x8xbf16>
    %88 = vector.extract_strided_slice %11 {offsets = [0, 24], sizes = [16, 8], strides = [1, 1]} : vector<16x32xf32> to vector<16x8xf32>
    %89 = arith.truncf %88 : vector<16x8xf32> to vector<16x8xbf16>
    %cst_29 = arith.constant dense<0.000000e+00> : vector<16x16xf32>
    %90 = tpu.matmul %85, %87, %cst_29 {dimension_numbers = #tpu.dot_dimension_numbers<[1], [1], [0], [0], [0, 0, 1, 0], [], []>} : vector<16x8xbf16>, vector<16x8xbf16>, vector<16x16xf32> -> vector<16x16xf32>
    %cst_30 = arith.constant 0.176776692 : f32
    %91 = vector.broadcast %cst_30 : f32 to vector<16x16xf32>
    %92 = arith.mulf %90, %91 : vector<16x16xf32>
    %cst_31 = arith.constant 0xFF800000 : f32
    %93 = vector.broadcast %cst_31 : f32 to vector<16x16xf32>
    %94 = arith.select %14, %92, %93 : vector<16x16xi1>, vector<16x16xf32>
    %cst_32 = arith.constant dense<0xFF800000> : vector<16xf32>
    %95 = vector.multi_reduction <maximumf>, %94, %cst_32 [1] : vector<16x16xf32> to vector<16xf32>
    %96 = vector.shape_cast %95 : vector<16xf32> to vector<16x1xf32>
    %97 = vector.broadcast %96 : vector<16x1xf32> to vector<16x16xf32>
    %98 = arith.subf %94, %97 : vector<16x16xf32>
    %99 = math.exp %98 : vector<16x16xf32>
    %cst_33 = arith.constant dense<0.000000e+00> : vector<16xf32>
    %100 = vector.multi_reduction <add>, %99, %cst_33 [1] : vector<16x16xf32> to vector<16xf32>
    %101 = vector.shape_cast %100 : vector<16xf32> to vector<16x1xf32>
    %102 = tpu.reciprocal %101 {approx = true} : vector<16x1xf32> -> vector<16x1xf32>
    %103 = vector.broadcast %102 : vector<16x1xf32> to vector<16x16xf32>
    %104 = arith.mulf %99, %103 : vector<16x16xf32>
    %105 = arith.truncf %104 : vector<16x16xf32> to vector<16x16xbf16>
    %cst_34 = arith.constant dense<0.000000e+00> : vector<16x8xf32>
    %106 = tpu.matmul %105, %89, %cst_34 {dimension_numbers = #tpu.dot_dimension_numbers<[1], [0], [0], [1], [0, 0, 1, 1], [], []>} : vector<16x16xbf16>, vector<16x8xbf16>, vector<16x8xf32> -> vector<16x8xf32>
    %107 = tpu.concatenate %37, %60, %83, %106 in 1 : vector<16x8xf32>, vector<16x8xf32>, vector<16x8xf32>, vector<16x8xf32> -> vector<16x32xf32>
    %108 = arith.truncf %107 : vector<16x32xf32> to vector<16x32xbf16>
    %c0_35 = arith.constant 0 : index
    %c0_36 = arith.constant 0 : index
    %109 = vector.load %arg3[%c0_35, %c0_36] : memref<32x32xbf16, #tpu.memory_space<vmem>>, vector<32x32xbf16>
    %cst_37 = arith.constant dense<0.000000e+00> : vector<16x32xf32>
    %110 = tpu.matmul %108, %109, %cst_37 {dimension_numbers = #tpu.dot_dimension_numbers<[1], [0], [0], [1], [0, 0, 1, 1], [], []>} : vector<16x32xbf16>, vector<32x32xbf16>, vector<16x32xf32> -> vector<16x32xf32>
    %c0_38 = arith.constant 0 : index
    %c0_39 = arith.constant 0 : index
    %111 = vector.load %arg4[%c0_38, %c0_39] : memref<1x32xf32, #tpu.memory_space<vmem>>, vector<1x32xf32>
    %112 = vector.broadcast %111 : vector<1x32xf32> to vector<16x32xf32>
    %113 = arith.addf %110, %112 : vector<16x32xf32>
    %c0_40 = arith.constant 0 : index
    %c0_41 = arith.constant 0 : index
    %c0_42 = arith.constant 0 : index
    %114 = vector.load %arg5[%c0_40, %c0_41, %c0_42] : memref<1x16x32xf32, #tpu.memory_space<vmem>>, vector<1x16x32xf32>
    %115 = vector.shape_cast %114 : vector<1x16x32xf32> to vector<16x32xf32>
    %116 = vector.shape_cast %113 : vector<16x32xf32> to vector<1x16x32xf32>
    tpu.vector_store %arg5[%c0_40, %c0_41, %c0_42], %116 {strides = array<i32>} : memref<1x16x32xf32, #tpu.memory_space<vmem>>, vector<1x16x32xf32>,
    return
  }
  func.func @transform_0(%arg0: i32) -> (i32, i32, i32) {
    %c0_i32 = arith.constant 0 : i32
    %c0_i32_0 = arith.constant 0 : i32
    %c0_i32_1 = arith.constant 0 : i32
    return %arg0, %c0_i32, %c0_i32_0 : i32, i32, i32
  }
  func.func @transform_1(%arg0: i32) -> (i32, i32, i32) {
    %c0_i32 = arith.constant 0 : i32
    %c0_i32_0 = arith.constant 0 : i32
    %c0_i32_1 = arith.constant 0 : i32
    %c0_i32_2 = arith.constant 0 : i32
    return %c0_i32, %c0_i32_0, %c0_i32_1 : i32, i32, i32
  }
  func.func @transform_2(%arg0: i32) -> (i32, i32) {
    %c0_i32 = arith.constant 0 : i32
    %c0_i32_0 = arith.constant 0 : i32
    %c0_i32_1 = arith.constant 0 : i32
    return %c0_i32, %c0_i32_0 : i32, i32
  }
  func.func @transform_3(%arg0: i32) -> (i32, i32) {
    %c0_i32 = arith.constant 0 : i32
    %c0_i32_0 = arith.constant 0 : i32
    %c0_i32_1 = arith.constant 0 : i32
    return %c0_i32, %c0_i32_0 : i32, i32
  }
  func.func @transform_4(%arg0: i32) -> (i32, i32, i32) {
    %c0_i32 = arith.constant 0 : i32
    %c0_i32_0 = arith.constant 0 : i32
    %c0_i32_1 = arith.constant 0 : i32
    return %arg0, %c0_i32, %c0_i32_0 : i32, i32, i32
  }
}

</mosaic_0001>

<llo_original>
// kernel: tpu_custom_call.1
$region0: #{tpu_custom_call.1}
  #allocation0 [shape = 'u32[]', space=smem, size = 0x4, offset = 0x4, fixed_abs, tag = 'smem constant byte address 0x4 - core index']
  #allocation1 [shape = 'u32[144,128]{1,0:T(1,128)}', space=vmem, size = 0x12000, scoped, tag = 'internal scratch']
  %s0 = inlined_call_operand.hbm [shape: f32[2,16,32], index: 0, kind: input, shape index: {}]
  %s1 = inlined_call_operand.hbm [shape: bf16[3,32,32], index: 1, kind: input, shape index: {}]
  %s2 = inlined_call_operand.hbm [shape: bf16[32,32], index: 2, kind: input, shape index: {}]
  %s3 = inlined_call_operand.vmem [shape: f32[1,32], index: 3, kind: input, shape index: {}]
  %s4 = inlined_call_operand.hbm [shape: f32[2,16,32], index: 4, kind: output, shape index: {}]
  %s5 = sld [smem:[#allocation0]]
  $region61: #{tpu_custom_call.1} parent=0
    _
  %s7 = ssub.s32 1, %s5
  %s8 = scalar_select 0, %s7, %s5
  $region1: #{tpu_custom_call.1} parent=0
    #allocation2 [shape = 'u8[16384]{0}', space=vmem, size = 0x4000, scoped, tag = 'input window, operand 0']
    #allocation3 [shape = 's32[2]{0}', space=sflag, size = 0x8, scoped, tag = 'scoped memory for tpu_custom_call.1']
    #allocation4 [shape = 's32[2]{0}', space=sflag, size = 0x8, scoped, tag = 'scoped memory for tpu_custom_call.1']
    #allocation5 [shape = 'u8[24576]{0}', space=vmem, size = 0x6000, scoped, tag = 'input window, operand 1, single buffered']
    #allocation6 [shape = 's32[1]{0}', space=sflag, size = 0x4, scoped, tag = 'scoped memory for tpu_custom_call.1']
    #allocation7 [shape = 'u8[8192]{0}', space=vmem, size = 0x2000, scoped, tag = 'input window, operand 2, single buffered']
    #allocation8 [shape = 'u8[16384]{0}', space=vmem, size = 0x4000, scoped, tag = 'output window, operand 0']
    %9 = vsyncpa [#allocation3], 0
    %s10 = scalar_lea.sflag [#allocation3], 1
    %11 = vsyncpa %s10, 0
    %12 = vsyncpa [#allocation6], 0
    %13 = vsyncpa [#allocation4], 0
    %s14 = scalar_lea.sflag [#allocation4], 1
    %15 = vsyncpa %s14, 0
    loop: start=0, step=1, limit=4
    $region2: #{tpu_custom_call.1} parent=1 // loop_pre_header
      _
    $region3: #{tpu_custom_call.1} parent=1 // loop_header
      %s17 = sphi 0, %s21
      %p18 = scmp.ge.s32.totalorder %s17, 4
      %s27 = sphi 0, %s29
      %s30 = sphi 0, %s27
      %s31 = sphi 0, %s30
      %s47 = sphi 0, %s31
      %s51 = sphi 0, %s51
      %s53 = sphi 0, %s51
      %s54 = sphi 0, %s53
      %s68 = sphi 0, %s54
      %s72 = sphi 0, %s72
      %s74 = sphi 0, %s72
      %s75 = sphi 0, %s74
      %s89 = sphi 0, %s75
      %s93 = sphi 0, %s93
      %s95 = sphi 0, %s93
      %s96 = sphi 0, %s95
      %s110 = sphi 0, %s96
      %s116 = sphi 0, %s118
      %s119 = sphi 0, %s116
      %s120 = sphi 0, %s119
      %s136 = sphi 0, %s120
    $region4: #{tpu_custom_call.1} parent=1 // loop_header_branch
      %20 = sbr.rel (%p18) target = $region8
    $region5: #{tpu_custom_call.1} parent=1 // loop_body
      %s22 = ssub.s32 %s17, 1
      %s23 = ssub.s32 %s17, 2
      %s24 = sadd.s32 %s17, 1
      %s25 = ssub.s32 %s17, %s24
      %p26 = scmp.eq.s32.totalorder %s25, 0
      %s28 = sadd.s32 %s27, 1
      %s29 = scalar_select %p26, %s27, %s28
      %p32 = pneg %p26
      %p33 = scmp.eq.s32.totalorder %s17, 1
      %p34 = por %p32, %p33
      %p35 = scmp.ne.s32.totalorder %s27, %s30
      %p36 = scmp.eq.s32.totalorder %s17, 0
      %p37 = por %p35, %p36
      %p38 = scmp.ne.s32.totalorder %s27, %s30
      %p39 = scmp.eq.s32.totalorder %s22, 1
      %p40 = por %p38, %p39
      %p41 = scmp.ne.s32.totalorder %s30, %s31
      %p42 = scmp.eq.s32.totalorder %s22, 0
      %p43 = por %p41, %p42
      %p44 = scmp.ne.s32.totalorder %s30, %s31
      %p45 = scmp.eq.s32.totalorder %s23, 1
      %p46 = por %p44, %p45
      %p48 = scmp.ne.s32.totalorder %s31, %s47
      %p49 = scmp.eq.s32.totalorder %s23, 0
      %p50 = por %p48, %p49
      %s52 = sadd.s32 %s51, 1
      %p55 = scmp.eq.s32.totalorder %s17, 1
      %p56 = scmp.ne.s32.totalorder %s51, %s53
      %p57 = scmp.eq.s32.totalorder %s17, 0
      %p58 = por %p56, %p57
      %p59 = scmp.ne.s32.totalorder %s51, %s53
      %p60 = scmp.eq.s32.totalorder %s22, 1
      %p61 = por %p59, %p60
      %p62 = scmp.ne.s32.totalorder %s53, %s54
      %p63 = scmp.eq.s32.totalorder %s22, 0
      %p64 = por %p62, %p63
      %p65 = scmp.ne.s32.totalorder %s53, %s54
      %p66 = scmp.eq.s32.totalorder %s23, 1
      %p67 = por %p65, %p66
      %p69 = scmp.ne.s32.totalorder %s54, %s68
      %p70 = scmp.eq.s32.totalorder %s23, 0
      %p71 = por %p69, %p70
      %s73 = sadd.s32 %s72, 1
      %p76 = scmp.eq.s32.totalorder %s17, 1
      %p77 = scmp.ne.s32.totalorder %s72, %s74
      %p78 = scmp.eq.s32.totalorder %s17, 0
      %p79 = por %p77, %p78
      %p80 = scmp.ne.s32.totalorder %s72, %s74
      %p81 = scmp.eq.s32.totalorder %s22, 1
      %p82 = por %p80, %p81
      %p83 = scmp.ne.s32.totalorder %s74, %s75
      %p84 = scmp.eq.s32.totalorder %s22, 0
      %p85 = por %p83, %p84
      %p86 = scmp.ne.s32.totalorder %s74, %s75
      %p87 = scmp.eq.s32.totalorder %s23, 1
      %p88 = por %p86, %p87
      %p90 = scmp.ne.s32.totalorder %s75, %s89
      %p91 = scmp.eq.s32.totalorder %s23, 0
      %p92 = por %p90, %p91
      %s94 = sadd.s32 %s93, 1
      %p97 = scmp.eq.s32.totalorder %s17, 1
      %p98 = scmp.ne.s32.totalorder %s93, %s95
      %p99 = scmp.eq.s32.totalorder %s17, 0
      %p100 = por %p98, %p99
      %p101 = scmp.ne.s32.totalorder %s93, %s95
      %p102 = scmp.eq.s32.totalorder %s22, 1
      %p103 = por %p101, %p102
      %p104 = scmp.ne.s32.totalorder %s95, %s96
      %p105 = scmp.eq.s32.totalorder %s22, 0
      %p106 = por %p104, %p105
      %p107 = scmp.ne.s32.totalorder %s95, %s96
      %p108 = scmp.eq.s32.totalorder %s23, 1
      %p109 = por %p107, %p108
      %p111 = scmp.ne.s32.totalorder %s96, %s110
      %p112 = scmp.eq.s32.totalorder %s23, 0
      %p113 = por %p111, %p112
      %s114 = ssub.s32 %s17, %s24
      %p115 = scmp.eq.s32.totalorder %s114, 0
      %s117 = sadd.s32 %s116, 1
      %s118 = scalar_select %p115, %s116, %s117
      %p121 = pneg %p115
      %p122 = scmp.eq.s32.totalorder %s17, 1
      %p123 = por %p121, %p122
      %p124 = scmp.ne.s32.totalorder %s116, %s119
      %p125 = scmp.eq.s32.totalorder %s17, 0
      %p126 = por %p124, %p125
      %p127 = scmp.ne.s32.totalorder %s116, %s119
      %p128 = scmp.eq.s32.totalorder %s22, 1
      %p129 = por %p127, %p128
      %p130 = scmp.ne.s32.totalorder %s119, %s120
      %p131 = scmp.eq.s32.totalorder %s22, 0
      %p132 = por %p130, %p131
      %p133 = scmp.ne.s32.totalorder %s119, %s120
      %p134 = scmp.eq.s32.totalorder %s23, 1
      %p135 = por %p133, %p134
      %p137 = scmp.ne.s32.totalorder %s120, %s136
      %p138 = scmp.eq.s32.totalorder %s23, 0
      %p139 = por %p137, %p138
      %p140 = scmp.le.s32.totalorder 1, %s17
      %p141 = scmp.lt.s32.totalorder %s17, 3
      %p142 = pnand %p140, %p141
      %p143 = pneg %p142
      // Predicated region
      $region9: #{tpu_custom_call.1} parent=5 // pred_check
        _
      $region10: #{tpu_custom_call.1} parent=5 // pred_check_branch
        %145 = sbr.rel (%p142) target = $region12
      $region11: #{tpu_custom_call.1} parent=5 // pred_region
        %s146 = ssub.s32 %s17, 1
        // Predicated region
        $region13: #{tpu_custom_call.1} parent=11 // pred_check
          %p147 = pneg %p64
        $region14: #{tpu_custom_call.1} parent=11 // pred_check_branch
          %149 = sbr.rel (%p147) target = $region16
        $region15: #{tpu_custom_call.1} parent=11 // pred_region
          %s151 = ssub.s32 768, 768
          %152 = vsyncadd [#allocation6], %s151
          %s153 = sshll.u32 [#allocation5], 4
          %s154 = int_to_ptr.vmem [resolvable:$true] %s153
          %159 = dma.hbm_to_vmem [thread:$0]  %s1, 768, %s154, [#allocation6], 64, 64, 4
        $region16: #{tpu_custom_call.1} parent=11 // pred_fallthru
          _
        // Predicated region
        $region17: #{tpu_custom_call.1} parent=11 // pred_check
          %p160 = pneg %p85
        $region18: #{tpu_custom_call.1} parent=11 // pred_check_branch
          %162 = sbr.rel (%p160) target = $region20
        $region19: #{tpu_custom_call.1} parent=11 // pred_region
          %s164 = ssub.s32 256, 256
          %165 = vsyncadd [#allocation6], %s164
          %s166 = sshll.u32 [#allocation7], 4
          %s167 = int_to_ptr.vmem [resolvable:$true] %s166
          %172 = dma.hbm_to_vmem [thread:$0]  %s2, 256, %s167, [#allocation6], 64, 64, 4
        $region20: #{tpu_custom_call.1} parent=11 // pred_fallthru
          _
        // Predicated region
        $region21: #{tpu_custom_call.1} parent=11 // pred_check
          %p173 = pneg %p106
        $region22: #{tpu_custom_call.1} parent=11 // pred_check_branch
          %175 = sbr.rel (%p173) target = $region24
        $region23: #{tpu_custom_call.1} parent=11 // pred_region
          _
        $region24: #{tpu_custom_call.1} parent=11 // pred_fallthru
          _
      $region12: #{tpu_custom_call.1} parent=5 // pred_fallthru
        _
      %p176 = scmp.lt.s32.totalorder %s17, 2
      // Predicated region
      $region25: #{tpu_custom_call.1} parent=5 // pred_check
        %p177 = pneg %p176
      $region26: #{tpu_custom_call.1} parent=5 // pred_check_branch
        %179 = sbr.rel (%p177) target = $region28
      $region27: #{tpu_custom_call.1} parent=5 // pred_region
        // Predicated region
        $region29: #{tpu_custom_call.1} parent=27 // pred_check
          %p180 = pneg %p37
        $region30: #{tpu_custom_call.1} parent=27 // pred_check_branch
          %182 = sbr.rel (%p180) target = $region32
        $region31: #{tpu_custom_call.1} parent=27 // pred_region
          %s183 = sand.u32 %s27, 1
          %s184 = scalar_lea.sflag [#allocation3], %s183
          %s185 = sand.u32 %s27, 1
          %s186 = smul.addr %s185, 16
          %s187 = scalar_lea.vmem [#allocation2], %s186
          %s189 = ssub.s32 256, 256
          %190 = vsyncadd %s184, %s189
          %s191 = smul.addr %s17, 2
          %s192 = smul.addr %s191, 128
          %s193 = scalar_lea.hbm %s0, %s192
          %s194 = sshll.u32 %s187, 4
          %s195 = int_to_ptr.vmem [resolvable:$true] %s194
          %200 = dma.hbm_to_vmem [thread:$0]  %s193, 256, %s195, %s184, 128, 128, 8
        $region32: #{tpu_custom_call.1} parent=27 // pred_fallthru
          _
      $region28: #{tpu_custom_call.1} parent=5 // pred_fallthru
        _
      %p201 = scmp.le.s32.totalorder 1, %s17
      %p202 = scmp.lt.s32.totalorder %s17, 3
      %p203 = pnand %p201, %p202
      %p204 = pneg %p203
      // Predicated region
      $region33: #{tpu_custom_call.1} parent=5 // pred_check
        _
      $region34: #{tpu_custom_call.1} parent=5 // pred_check_branch
        %206 = sbr.rel (%p203) target = $region36
      $region35: #{tpu_custom_call.1} parent=5 // pred_region
        %s207 = ssub.s32 %s17, 1
        %s208 = sand.u32 %s30, 1
        %s209 = scalar_lea.sflag [#allocation3], %s208
        %s210 = sand.u32 %s30, 1
        %s211 = smul.addr %s210, 16
        %s212 = scalar_lea.vmem [#allocation2], %s211
        // Predicated region
        $region37: #{tpu_custom_call.1} parent=35 // pred_check
          %p213 = pneg %p43
        $region38: #{tpu_custom_call.1} parent=35 // pred_check_branch
          %215 = sbr.rel (%p213) target = $region40
        $region39: #{tpu_custom_call.1} parent=35 // pred_region
          %216 = dma.done %s209, 256
        $region40: #{tpu_custom_call.1} parent=35 // pred_fallthru
          _
        // Predicated region
        $region41: #{tpu_custom_call.1} parent=35 // pred_check
          %p217 = pneg %p64
        $region42: #{tpu_custom_call.1} parent=35 // pred_check_branch
          %219 = sbr.rel (%p217) target = $region44
        $region43: #{tpu_custom_call.1} parent=35 // pred_region
          %220 = dma.done [#allocation6], 768
        $region44: #{tpu_custom_call.1} parent=35 // pred_fallthru
          _
        // Predicated region
        $region45: #{tpu_custom_call.1} parent=35 // pred_check
          %p221 = pneg %p85
        $region46: #{tpu_custom_call.1} parent=35 // pred_check_branch
          %223 = sbr.rel (%p221) target = $region48
        $region47: #{tpu_custom_call.1} parent=35 // pred_region
          %224 = dma.done [#allocation6], 256
        $region48: #{tpu_custom_call.1} parent=35 // pred_fallthru
          _
        %s225 = sand.u32 %s30, 1
        %s226 = scalar_lea.sflag [#allocation3], %s225
        %s227 = sand.u32 %s30, 1
        %s228 = smul.addr %s227, 16
        %s229 = scalar_lea.vmem [#allocation2], %s228
        %p230 = pneg %p43
        %p231 = pneg %p40
        %p232 = pneg %p64
        %p233 = pneg %p61
        %p234 = pneg %p85
        %p235 = pneg %p82
        %p236 = pneg %p106
        %p237 = pneg %p103
        %p238 = pneg %p132
        %p239 = pneg %p129
        %s240 = sand.u32 %s119, 1
        %s241 = scalar_lea.sflag [#allocation4], %s240
        %s242 = sand.u32 %s119, 1
        %s243 = smul.addr %s242, 16
        %s244 = scalar_lea.vmem [#allocation8], %s243
        %v246 = vld [vmem:[%s212] sm:$0xff]
        %v247 = vld [vmem:[%s212 + $0x8] sm:$0xff]
        %v248 = vpack.c.bf16 %v247, %v246
        %v249 = vld [vmem:[#allocation5] sm:$0xf]
        %v250 = vld [vmem:[#allocation5 + $0x4] sm:$0xf]
        %v251 = vld [vmem:[#allocation5 + $0x8] sm:$0xf]
        %v252 = vld [vmem:[#allocation5 + $0xc] sm:$0xf]
        %v257 = vunpack.c.l.b16 %v249
        %v258 = vunpack.c.l.b16 %v250
        %v259 = vunpack.c.l.b16 %v251
        %v260 = vunpack.c.l.b16 %v252
        %v261 = vpack.c.b16 %v258, %v257
        %v262 = vpack.c.b16 %v260, %v259
        %vm265 = vcmask 261120
        %v267 = vsel %vm265, %v248, 0
        %269 = vmatprep.subr.bf16.mxu0 0
        %270 = vmatpush1.bf16.msra.mxu0 %v261
        %271 = vmatprep.subr.bf16.mxu0 0
        %272 = vmatpush1.bf16.msra.mxu0 %v262
        %273 = vmatprep.subr.bf16.mxu0 0
        %274 = vmatpush1.bf16.msra.mxu0 0
        %275 = vmatprep.subr.bf16.mxu0 0
        %276 = vmatpush1.bf16.msra.mxu0 0
        %277 = vmatprep.subr.bf16.mxu0 0
        %278 = vmatpush1.bf16.msra.mxu0 0
        %279 = vmatprep.subr.bf16.mxu0 0
        %280 = vmatpush1.bf16.msra.mxu0 0
        %281 = vmatprep.subr.bf16.mxu0 0
        %282 = vmatpush1.bf16.msra.mxu0 0
        %283 = vmatprep.subr.bf16.mxu0 0
        %284 = vmatpush1.bf16.msra.mxu0 0
        %285 = vmatprep.subr.bf16.mxu0 0
        %286 = vmatpush1.bf16.msra.mxu0 0
        %287 = vmatprep.subr.bf16.mxu0 0
        %288 = vmatpush1.bf16.msra.mxu0 0
        %289 = vmatprep.subr.bf16.mxu0 0
        %290 = vmatpush1.bf16.msra.mxu0 0
        %291 = vmatprep.subr.bf16.mxu0 0
        %292 = vmatpush1.bf16.msra.mxu0 0
        %293 = vmatprep.subr.bf16.mxu0 0
        %294 = vmatpush1.bf16.msra.mxu0 0
        %295 = vmatprep.subr.bf16.mxu0 0
        %296 = vmatpush1.bf16.msra.mxu0 0
        %297 = vmatprep.subr.bf16.mxu0 0
        %298 = vmatpush1.bf16.msra.mxu0 0
        %299 = vmatprep.subr.bf16.mxu0 0
        %300 = vmatpush1.bf16.msra.mxu0 0
        %301 = vmatprep.mubr.bf16.mxu0 0
        %302 = vmatmul.mubr.bf16.gmra.mrb[0].mxu0 %v267
        %v303 = vpop.f32.mrb[0].mxu0
        %v304 = vadd.f32 0.0, %v303
        %v305 = vpop.f32.mrb[0].mxu0
        %v306 = vpop.f32.mrb[0].mxu0
        %v307 = vadd.f32 0.0, %v306
        %v308 = vpop.f32.mrb[0].mxu0
        %309 = vdwg.mxu0
        %s310 = scalar_lea.vmem [#allocation5], 16
        %v311 = vld [vmem:[%s310] sm:$0xf]
        %v312 = vld [vmem:[%s310 + $0x4] sm:$0xf]
        %v313 = vld [vmem:[%s310 + $0x8] sm:$0xf]
        %v314 = vld [vmem:[%s310 + $0xc] sm:$0xf]
        %v319 = vunpack.c.l.b16 %v311
        %v320 = vunpack.c.l.b16 %v312
        %v321 = vunpack.c.l.b16 %v313
        %v322 = vunpack.c.l.b16 %v314
        %v323 = vpack.c.b16 %v320, %v319
        %v324 = vpack.c.b16 %v322, %v321
        %327 = vmatprep.subr.bf16.mxu0 0
        %328 = vmatpush1.bf16.msra.mxu0 %v323
        %329 = vmatprep.subr.bf16.mxu0 0
        %330 = vmatpush1.bf16.msra.mxu0 %v324
        %331 = vmatprep.subr.bf16.mxu0 0
        %332 = vmatpush1.bf16.msra.mxu0 0
        %333 = vmatprep.subr.bf16.mxu0 0
        %334 = vmatpush1.bf16.msra.mxu0 0
        %335 = vmatprep.subr.bf16.mxu0 0
        %336 = vmatpush1.bf16.msra.mxu0 0
        %337 = vmatprep.subr.bf16.mxu0 0
        %338 = vmatpush1.bf16.msra.mxu0 0
        %339 = vmatprep.subr.bf16.mxu0 0
        %340 = vmatpush1.bf16.msra.mxu0 0
        %341 = vmatprep.subr.bf16.mxu0 0
        %342 = vmatpush1.bf16.msra.mxu0 0
        %343 = vmatprep.subr.bf16.mxu0 0
        %344 = vmatpush1.bf16.msra.mxu0 0
        %345 = vmatprep.subr.bf16.mxu0 0
        %346 = vmatpush1.bf16.msra.mxu0 0
        %347 = vmatprep.subr.bf16.mxu0 0
        %348 = vmatpush1.bf16.msra.mxu0 0
        %349 = vmatprep.subr.bf16.mxu0 0
        %350 = vmatpush1.bf16.msra.mxu0 0
        %351 = vmatprep.subr.bf16.mxu0 0
        %352 = vmatpush1.bf16.msra.mxu0 0
        %353 = vmatprep.subr.bf16.mxu0 0
        %354 = vmatpush1.bf16.msra.mxu0 0
        %355 = vmatprep.subr.bf16.mxu0 0
        %356 = vmatpush1.bf16.msra.mxu0 0
        %357 = vmatprep.subr.bf16.mxu0 0
        %358 = vmatpush1.bf16.msra.mxu0 0
        %359 = vmatprep.mubr.bf16.mxu0 0
        %360 = vmatmul.mubr.bf16.gmra.mrb[0].mxu0 %v267
        %v361 = vpop.f32.mrb[0].mxu0
        %v362 = vadd.f32 0.0, %v361
        %v363 = vpop.f32.mrb[0].mxu0
        %v364 = vpop.f32.mrb[0].mxu0
        %v365 = vadd.f32 0.0, %v364
        %v366 = vpop.f32.mrb[0].mxu0
        %367 = vdwg.mxu0
        %s368 = scalar_lea.vmem [#allocation5], 32
        %v369 = vld [vmem:[%s368] sm:$0xf]
        %v370 = vld [vmem:[%s368 + $0x4] sm:$0xf]
        %v371 = vld [vmem:[%s368 + $0x8] sm:$0xf]
        %v372 = vld [vmem:[%s368 + $0xc] sm:$0xf]
        %v377 = vunpack.c.l.b16 %v369
        %v378 = vunpack.c.l.b16 %v370
        %v379 = vunpack.c.l.b16 %v371
        %v380 = vunpack.c.l.b16 %v372
        %v381 = vpack.c.b16 %v378, %v377
        %v382 = vpack.c.b16 %v380, %v379
        %385 = vmatprep.subr.bf16.mxu0 0
        %386 = vmatpush1.bf16.msra.mxu0 %v381
        %387 = vmatprep.subr.bf16.mxu0 0
        %388 = vmatpush1.bf16.msra.mxu0 %v382
        %389 = vmatprep.subr.bf16.mxu0 0
        %390 = vmatpush1.bf16.msra.mxu0 0
        %391 = vmatprep.subr.bf16.mxu0 0
        %392 = vmatpush1.bf16.msra.mxu0 0
        %393 = vmatprep.subr.bf16.mxu0 0
        %394 = vmatpush1.bf16.msra.mxu0 0
        %395 = vmatprep.subr.bf16.mxu0 0
        %396 = vmatpush1.bf16.msra.mxu0 0
        %397 = vmatprep.subr.bf16.mxu0 0
        %398 = vmatpush1.bf16.msra.mxu0 0
        %399 = vmatprep.subr.bf16.mxu0 0
        %400 = vmatpush1.bf16.msra.mxu0 0
        %401 = vmatprep.subr.bf16.mxu0 0
        %402 = vmatpush1.bf16.msra.mxu0 0
        %403 = vmatprep.subr.bf16.mxu0 0
        %404 = vmatpush1.bf16.msra.mxu0 0
        %405 = vmatprep.subr.bf16.mxu0 0
        %406 = vmatpush1.bf16.msra.mxu0 0
        %407 = vmatprep.subr.bf16.mxu0 0
        %408 = vmatpush1.bf16.msra.mxu0 0
        %409 = vmatprep.subr.bf16.mxu0 0
        %410 = vmatpush1.bf16.msra.mxu0 0
        %411 = vmatprep.subr.bf16.mxu0 0
        %412 = vmatpush1.bf16.msra.mxu0 0
        %413 = vmatprep.subr.bf16.mxu0 0
        %414 = vmatpush1.bf16.msra.mxu0 0
        %415 = vmatprep.subr.bf16.mxu0 0
        %416 = vmatpush1.bf16.msra.mxu0 0
        %417 = vmatprep.mubr.bf16.mxu0 0
        %418 = vmatmul.mubr.bf16.gmra.mrb[0].mxu0 %v267
        %v419 = vpop.f32.mrb[0].mxu0
        %v420 = vadd.f32 0.0, %v419
        %v421 = vpop.f32.mrb[0].mxu0
        %v422 = vpop.f32.mrb[0].mxu0
        %v423 = vadd.f32 0.0, %v422
        %v424 = vpop.f32.mrb[0].mxu0
        %425 = vdwg.mxu0
        %v426 = vlaneseq
        %v427 = vshrl.u32 %v426, 7
        %v428 = vadd.s32 %v427, 8
        %v429 = vlaneseq
        %v430 = vand.u32 %v429, 127
        %vm431 = vcmp.le.s32.totalorder %v430, %v427
        %vm432 = vcmp.le.s32.totalorder %v430, %v428
        %v433 = vpack.c.bf16 %v307, %v304
        %v434 = vpack.c.bf16 %v365, %v362
        %v435 = vpack.c.bf16 %v423, %v420
        %vm436 = vcmask 64512
        %v438 = vsel %vm436, %v433, 0
        %v441 = vsel %vm436, %v434, 0
        %443 = vmatprep.subr.bf16.mxu0 0
        %444 = vmatpush1.bf16.xpose.msra.mxu0 %v441
        %445 = vmatprep.subr.bf16.mxu0 0
        %446 = vmatpush1.bf16.xpose.msra.mxu0 0
        %447 = vmatprep.subr.bf16.mxu0 0
        %448 = vmatpush1.bf16.xpose.msra.mxu0 0
        %449 = vmatprep.subr.bf16.mxu0 0
        %450 = vmatpush1.bf16.xpose.msra.mxu0 0
        %451 = vmatprep.subr.bf16.mxu0 0
        %452 = vmatpush1.bf16.xpose.msra.mxu0 0
        %453 = vmatprep.subr.bf16.mxu0 0
        %454 = vmatpush1.bf16.xpose.msra.mxu0 0
        %455 = vmatprep.subr.bf16.mxu0 0
        %456 = vmatpush1.bf16.xpose.msra.mxu0 0
        %457 = vmatprep.subr.bf16.mxu0 0
        %458 = vmatpush1.bf16.xpose.msra.mxu0 0
        %459 = vmatprep.subr.bf16.mxu0 0
        %460 = vmatpush1.bf16.xpose.msra.mxu0 0
        %461 = vmatprep.subr.bf16.mxu0 0
        %462 = vmatpush1.bf16.xpose.msra.mxu0 0
        %463 = vmatprep.subr.bf16.mxu0 0
        %464 = vmatpush1.bf16.xpose.msra.mxu0 0
        %465 = vmatprep.subr.bf16.mxu0 0
        %466 = vmatpush1.bf16.xpose.msra.mxu0 0
        %467 = vmatprep.subr.bf16.mxu0 0
        %468 = vmatpush1.bf16.xpose.msra.mxu0 0
        %469 = vmatprep.subr.bf16.mxu0 0
        %470 = vmatpush1.bf16.xpose.msra.mxu0 0
        %471 = vmatprep.subr.bf16.mxu0 0
        %472 = vmatpush1.bf16.xpose.msra.mxu0 0
        %473 = vmatprep.subr.bf16.mxu0 0
        %474 = vmatpush1.bf16.xpose.msra.mxu0 0
        %475 = vmatprep.mubr.bf16.mxu0 0
        %476 = vmatmul.mubr.bf16.gmra.mrb[0].mxu0 %v438
        %v477 = vpop.f32.mrb[0].mxu0
        %v478 = vadd.f32 0.0, %v477
        %v479 = vpop.f32.mrb[0].mxu0
        %v480 = vpop.f32.mrb[0].mxu0
        %v481 = vadd.f32 0.0, %v480
        %v482 = vpop.f32.mrb[0].mxu0
        %483 = vdwg.mxu0
        %v484 = vmul.f32 %v478, 0.17677669
        %v485 = vmul.f32 %v481, 0.17677669
        %v486 = vsel %vm431, %v484, -inf
        %v487 = vsel %vm432, %v485, -inf
        %vm488 = vcmask 130048
        %v489 = vsel %vm488, %v486, -inf
        %490 = vmax.xlane.f32.xlu0 %v489
        %v491 = vpop.xlane.xlu0 %490
        %v492 = vsel %vm488, %v487, -inf
        %493 = vmax.xlane.f32.xlu0 %v492
        %v494 = vpop.xlane.xlu0 %493
        %v495 = vsub.f32 %v486, %v491
        %v496 = vsub.f32 %v487, %v494
        %v497 = vmul.f32 %v495, 1.442695
        %v498 = vpow.pop %v497
        %v499 = vmul.f32 %v496, 1.442695
        %v500 = vpow.pop %v499
        %v501 = vsel %vm488, %v498, 0.0
        %502 = vadd.xlane.f32.xlu0 %v501
        %v503 = vpop.xlane.xlu0 %502
        %v504 = vsel %vm488, %v500, 0.0
        %505 = vadd.xlane.f32.xlu0 %v504
        %v506 = vpop.xlane.xlu0 %505
        %v507 = vrcp.pop %v503
        %v508 = vrcp.pop %v506
        %v509 = vmul.f32 %v498, %v507
        %v510 = vmul.f32 %v500, %v508
        %v511 = vpack.c.bf16 %v510, %v509
        %v513 = vsel %vm488, %v511, 0
        %515 = vmatprep.subr.bf16.mxu0 0
        %516 = vmatpush1.bf16.msra.mxu0 %v435
        %517 = vmatprep.subr.bf16.mxu0 0
        %518 = vmatpush1.bf16.msra.mxu0 0
        %519 = vmatprep.subr.bf16.mxu0 0
        %520 = vmatpush1.bf16.msra.mxu0 0
        %521 = vmatprep.subr.bf16.mxu0 0
        %522 = vmatpush1.bf16.msra.mxu0 0
        %523 = vmatprep.subr.bf16.mxu0 0
        %524 = vmatpush1.bf16.msra.mxu0 0
        %525 = vmatprep.subr.bf16.mxu0 0
        %526 = vmatpush1.bf16.msra.mxu0 0
        %527 = vmatprep.subr.bf16.mxu0 0
        %528 = vmatpush1.bf16.msra.mxu0 0
        %529 = vmatprep.subr.bf16.mxu0 0
        %530 = vmatpush1.bf16.msra.mxu0 0
        %531 = vmatprep.subr.bf16.mxu0 0
        %532 = vmatpush1.bf16.msra.mxu0 0
        %533 = vmatprep.subr.bf16.mxu0 0
        %534 = vmatpush1.bf16.msra.mxu0 0
        %535 = vmatprep.subr.bf16.mxu0 0
        %536 = vmatpush1.bf16.msra.mxu0 0
        %537 = vmatprep.subr.bf16.mxu0 0
        %538 = vmatpush1.bf16.msra.mxu0 0
        %539 = vmatprep.subr.bf16.mxu0 0
        %540 = vmatpush1.bf16.msra.mxu0 0
        %541 = vmatprep.subr.bf16.mxu0 0
        %542 = vmatpush1.bf16.msra.mxu0 0
        %543 = vmatprep.subr.bf16.mxu0 0
        %544 = vmatpush1.bf16.msra.mxu0 0
        %545 = vmatprep.subr.bf16.mxu0 0
        %546 = vmatpush1.bf16.msra.mxu0 0
        %547 = vmatprep.mubr.bf16.mxu0 0
        %548 = vmatmul.mubr.bf16.gmra.mrb[0].mxu0 %v513
        %v549 = vpop.f32.mrb[0].mxu0
        %v550 = vadd.f32 0.0, %v549
        %v551 = vpop.f32.mrb[0].mxu0
        %v552 = vpop.f32.mrb[0].mxu0
        %v553 = vadd.f32 0.0, %v552
        %v554 = vpop.f32.mrb[0].mxu0
        %555 = vdwg.mxu0
        %557 = vrot.lane.b32.xlu0 %v433, 120
        %v558 = vpop.permute.xlu0 %557
        %560 = vrot.lane.b32.xlu0 %v434, 120
        %v561 = vpop.permute.xlu0 %560
        %v563 = vsel %vm436, %v558, 0
        %v566 = vsel %vm436, %v561, 0
        %568 = vmatprep.subr.bf16.mxu0 0
        %569 = vmatpush1.bf16.xpose.msra.mxu0 %v566
        %570 = vmatprep.subr.bf16.mxu0 0
        %571 = vmatpush1.bf16.xpose.msra.mxu0 0
        %572 = vmatprep.subr.bf16.mxu0 0
        %573 = vmatpush1.bf16.xpose.msra.mxu0 0
        %574 = vmatprep.subr.bf16.mxu0 0
        %575 = vmatpush1.bf16.xpose.msra.mxu0 0
        %576 = vmatprep.subr.bf16.mxu0 0
        %577 = vmatpush1.bf16.xpose.msra.mxu0 0
        %578 = vmatprep.subr.bf16.mxu0 0
        %579 = vmatpush1.bf16.xpose.msra.mxu0 0
        %580 = vmatprep.subr.bf16.mxu0 0
        %581 = vmatpush1.bf16.xpose.msra.mxu0 0
        %582 = vmatprep.subr.bf16.mxu0 0
        %583 = vmatpush1.bf16.xpose.msra.mxu0 0
        %584 = vmatprep.subr.bf16.mxu0 0
        %585 = vmatpush1.bf16.xpose.msra.mxu0 0
        %586 = vmatprep.subr.bf16.mxu0 0
        %587 = vmatpush1.bf16.xpose.msra.mxu0 0
        %588 = vmatprep.subr.bf16.mxu0 0
        %589 = vmatpush1.bf16.xpose.msra.mxu0 0
        %590 = vmatprep.subr.bf16.mxu0 0
        %591 = vmatpush1.bf16.xpose.msra.mxu0 0
        %592 = vmatprep.subr.bf16.mxu0 0
        %593 = vmatpush1.bf16.xpose.msra.mxu0 0
        %594 = vmatprep.subr.bf16.mxu0 0
        %595 = vmatpush1.bf16.xpose.msra.mxu0 0
        %596 = vmatprep.subr.bf16.mxu0 0
        %597 = vmatpush1.bf16.xpose.msra.mxu0 0
        %598 = vmatprep.subr.bf16.mxu0 0
        %599 = vmatpush1.bf16.xpose.msra.mxu0 0
        %600 = vmatprep.mubr.bf16.mxu0 0
        %601 = vmatmul.mubr.bf16.gmra.mrb[0].mxu0 %v563
        %v602 = vpop.f32.mrb[0].mxu0
        %v603 = vadd.f32 0.0, %v602
        %v604 = vpop.f32.mrb[0].mxu0
        %v605 = vpop.f32.mrb[0].mxu0
        %v606 = vadd.f32 0.0, %v605
        %v607 = vpop.f32.mrb[0].mxu0
        %608 = vdwg.mxu0
        %v609 = vmul.f32 %v603, 0.17677669
        %v610 = vmul.f32 %v606, 0.17677669
        %v611 = vsel %vm431, %v609, -inf
        %v612 = vsel %vm432, %v610, -inf
        %v613 = vsel %vm488, %v611, -inf
        %614 = vmax.xlane.f32.xlu0 %v613
        %v615 = vpop.xlane.xlu0 %614
        %v616 = vsel %vm488, %v612, -inf
        %617 = vmax.xlane.f32.xlu0 %v616
        %v618 = vpop.xlane.xlu0 %617
        %v619 = vsub.f32 %v611, %v615
        %v620 = vsub.f32 %v612, %v618
        %v621 = vmul.f32 %v619, 1.442695
        %v622 = vpow.pop %v621
        %v623 = vmul.f32 %v620, 1.442695
        %v624 = vpow.pop %v623
        %v625 = vsel %vm488, %v622, 0.0
        %626 = vadd.xlane.f32.xlu0 %v625
        %v627 = vpop.xlane.xlu0 %626
        %v628 = vsel %vm488, %v624, 0.0
        %629 = vadd.xlane.f32.xlu0 %v628
        %v630 = vpop.xlane.xlu0 %629
        %v631 = vrcp.pop %v627
        %v632 = vrcp.pop %v630
        %v633 = vmul.f32 %v622, %v631
        %v634 = vmul.f32 %v624, %v632
        %v635 = vpack.c.bf16 %v634, %v633
        %637 = vrot.lane.b32.xlu0 %v435, 120
        %v638 = vpop.permute.xlu0 %637
        %v641 = vsel %vm488, %v635, 0
        %643 = vmatprep.subr.bf16.mxu0 0
        %644 = vmatpush1.bf16.msra.mxu0 %v638
        %645 = vmatprep.subr.bf16.mxu0 0
        %646 = vmatpush1.bf16.msra.mxu0 0
        %647 = vmatprep.subr.bf16.mxu0 0
        %648 = vmatpush1.bf16.msra.mxu0 0
        %649 = vmatprep.subr.bf16.mxu0 0
        %650 = vmatpush1.bf16.msra.mxu0 0
        %651 = vmatprep.subr.bf16.mxu0 0
        %652 = vmatpush1.bf16.msra.mxu0 0
        %653 = vmatprep.subr.bf16.mxu0 0
        %654 = vmatpush1.bf16.msra.mxu0 0
        %655 = vmatprep.subr.bf16.mxu0 0
        %656 = vmatpush1.bf16.msra.mxu0 0
        %657 = vmatprep.subr.bf16.mxu0 0
        %658 = vmatpush1.bf16.msra.mxu0 0
        %659 = vmatprep.subr.bf16.mxu0 0
        %660 = vmatpush1.bf16.msra.mxu0 0
        %661 = vmatprep.subr.bf16.mxu0 0
        %662 = vmatpush1.bf16.msra.mxu0 0
        %663 = vmatprep.subr.bf16.mxu0 0
        %664 = vmatpush1.bf16.msra.mxu0 0
        %665 = vmatprep.subr.bf16.mxu0 0
        %666 = vmatpush1.bf16.msra.mxu0 0
        %667 = vmatprep.subr.bf16.mxu0 0
        %668 = vmatpush1.bf16.msra.mxu0 0
        %669 = vmatprep.subr.bf16.mxu0 0
        %670 = vmatpush1.bf16.msra.mxu0 0
        %671 = vmatprep.subr.bf16.mxu0 0
        %672 = vmatpush1.bf16.msra.mxu0 0
        %673 = vmatprep.subr.bf16.mxu0 0
        %674 = vmatpush1.bf16.msra.mxu0 0
        %675 = vmatprep.mubr.bf16.mxu0 0
        %676 = vmatmul.mubr.bf16.gmra.mrb[0].mxu0 %v641
        %v677 = vpop.f32.mrb[0].mxu0
        %v678 = vadd.f32 0.0, %v677
        %v679 = vpop.f32.mrb[0].mxu0
        %v680 = vpop.f32.mrb[0].mxu0
        %v681 = vadd.f32 0.0, %v680
        %v682 = vpop.f32.mrb[0].mxu0
        %683 = vdwg.mxu0
        %684 = vrot.lane.b32.xlu0 %v433, 112
        %v685 = vpop.permute.xlu0 %684
        %686 = vrot.lane.b32.xlu0 %v434, 112
        %v687 = vpop.permute.xlu0 %686
        %v689 = vsel %vm436, %v685, 0
        %v692 = vsel %vm436, %v687, 0
        %694 = vmatprep.subr.bf16.mxu0 0
        %695 = vmatpush1.bf16.xpose.msra.mxu0 %v692
        %696 = vmatprep.subr.bf16.mxu0 0
        %697 = vmatpush1.bf16.xpose.msra.mxu0 0
        %698 = vmatprep.subr.bf16.mxu0 0
        %699 = vmatpush1.bf16.xpose.msra.mxu0 0
        %700 = vmatprep.subr.bf16.mxu0 0
        %701 = vmatpush1.bf16.xpose.msra.mxu0 0
        %702 = vmatprep.subr.bf16.mxu0 0
        %703 = vmatpush1.bf16.xpose.msra.mxu0 0
        %704 = vmatprep.subr.bf16.mxu0 0
        %705 = vmatpush1.bf16.xpose.msra.mxu0 0
        %706 = vmatprep.subr.bf16.mxu0 0
        %707 = vmatpush1.bf16.xpose.msra.mxu0 0
        %708 = vmatprep.subr.bf16.mxu0 0
        %709 = vmatpush1.bf16.xpose.msra.mxu0 0
        %710 = vmatprep.subr.bf16.mxu0 0
        %711 = vmatpush1.bf16.xpose.msra.mxu0 0
        %712 = vmatprep.subr.bf16.mxu0 0
        %713 = vmatpush1.bf16.xpose.msra.mxu0 0
        %714 = vmatprep.subr.bf16.mxu0 0
        %715 = vmatpush1.bf16.xpose.msra.mxu0 0
        %716 = vmatprep.subr.bf16.mxu0 0
        %717 = vmatpush1.bf16.xpose.msra.mxu0 0
        %718 = vmatprep.subr.bf16.mxu0 0
        %719 = vmatpush1.bf16.xpose.msra.mxu0 0
        %720 = vmatprep.subr.bf16.mxu0 0
        %721 = vmatpush1.bf16.xpose.msra.mxu0 0
        %722 = vmatprep.subr.bf16.mxu0 0
        %723 = vmatpush1.bf16.xpose.msra.mxu0 0
        %724 = vmatprep.subr.bf16.mxu0 0
        %725 = vmatpush1.bf16.xpose.msra.mxu0 0
        %726 = vmatprep.mubr.bf16.mxu0 0
        %727 = vmatmul.mubr.bf16.gmra.mrb[0].mxu0 %v689
        %v728 = vpop.f32.mrb[0].mxu0
        %v729 = vadd.f32 0.0, %v728
        %v730 = vpop.f32.mrb[0].mxu0
        %v731 = vpop.f32.mrb[0].mxu0
        %v732 = vadd.f32 0.0, %v731
        %v733 = vpop.f32.mrb[0].mxu0
        %734 = vdwg.mxu0
        %v735 = vmul.f32 %v729, 0.17677669
        %v736 = vmul.f32 %v732, 0.17677669
        %v737 = vsel %vm431, %v735, -inf
        %v738 = vsel %vm432, %v736, -inf
        %v739 = vsel %vm488, %v737, -inf
        %740 = vmax.xlane.f32.xlu0 %v739
        %v741 = vpop.xlane.xlu0 %740
        %v742 = vsel %vm488, %v738, -inf
        %743 = vmax.xlane.f32.xlu0 %v742
        %v744 = vpop.xlane.xlu0 %743
        %v745 = vsub.f32 %v737, %v741
        %v746 = vsub.f32 %v738, %v744
        %v747 = vmul.f32 %v745, 1.442695
        %v748 = vpow.pop %v747
        %v749 = vmul.f32 %v746, 1.442695
        %v750 = vpow.pop %v749
        %v751 = vsel %vm488, %v748, 0.0
        %752 = vadd.xlane.f32.xlu0 %v751
        %v753 = vpop.xlane.xlu0 %752
        %v754 = vsel %vm488, %v750, 0.0
        %755 = vadd.xlane.f32.xlu0 %v754
        %v756 = vpop.xlane.xlu0 %755
        %v757 = vrcp.pop %v753
        %v758 = vrcp.pop %v756
        %v759 = vmul.f32 %v748, %v757
        %v760 = vmul.f32 %v750, %v758
        %v761 = vpack.c.bf16 %v760, %v759
        %762 = vrot.lane.b32.xlu0 %v435, 112
        %v763 = vpop.permute.xlu0 %762
        %v766 = vsel %vm488, %v761, 0
        %768 = vmatprep.subr.bf16.mxu0 0
        %769 = vmatpush1.bf16.msra.mxu0 %v763
        %770 = vmatprep.subr.bf16.mxu0 0
        %771 = vmatpush1.bf16.msra.mxu0 0
        %772 = vmatprep.subr.bf16.mxu0 0
        %773 = vmatpush1.bf16.msra.mxu0 0
        %774 = vmatprep.subr.bf16.mxu0 0
        %775 = vmatpush1.bf16.msra.mxu0 0
        %776 = vmatprep.subr.bf16.mxu0 0
        %777 = vmatpush1.bf16.msra.mxu0 0
        %778 = vmatprep.subr.bf16.mxu0 0
        %779 = vmatpush1.bf16.msra.mxu0 0
        %780 = vmatprep.subr.bf16.mxu0 0
        %781 = vmatpush1.bf16.msra.mxu0 0
        %782 = vmatprep.subr.bf16.mxu0 0
        %783 = vmatpush1.bf16.msra.mxu0 0
        %784 = vmatprep.subr.bf16.mxu0 0
        %785 = vmatpush1.bf16.msra.mxu0 0
        %786 = vmatprep.subr.bf16.mxu0 0
        %787 = vmatpush1.bf16.msra.mxu0 0
        %788 = vmatprep.subr.bf16.mxu0 0
        %789 = vmatpush1.bf16.msra.mxu0 0
        %790 = vmatprep.subr.bf16.mxu0 0
        %791 = vmatpush1.bf16.msra.mxu0 0
        %792 = vmatprep.subr.bf16.mxu0 0
        %793 = vmatpush1.bf16.msra.mxu0 0
        %794 = vmatprep.subr.bf16.mxu0 0
        %795 = vmatpush1.bf16.msra.mxu0 0
        %796 = vmatprep.subr.bf16.mxu0 0
        %797 = vmatpush1.bf16.msra.mxu0 0
        %798 = vmatprep.subr.bf16.mxu0 0
        %799 = vmatpush1.bf16.msra.mxu0 0
        %800 = vmatprep.mubr.bf16.mxu0 0
        %801 = vmatmul.mubr.bf16.gmra.mrb[0].mxu0 %v766
        %v802 = vpop.f32.mrb[0].mxu0
        %v803 = vadd.f32 0.0, %v802
        %v804 = vpop.f32.mrb[0].mxu0
        %v805 = vpop.f32.mrb[0].mxu0
        %v806 = vadd.f32 0.0, %v805
        %v807 = vpop.f32.mrb[0].mxu0
        %808 = vdwg.mxu0
        %809 = vrot.lane.b32.xlu0 %v433, 104
        %v810 = vpop.permute.xlu0 %809
        %811 = vrot.lane.b32.xlu0 %v434, 104
        %v812 = vpop.permute.xlu0 %811
        %v814 = vsel %vm436, %v810, 0
        %v817 = vsel %vm436, %v812, 0
        %819 = vmatprep.subr.bf16.mxu0 0
        %820 = vmatpush1.bf16.xpose.msra.mxu0 %v817
        %821 = vmatprep.subr.bf16.mxu0 0
        %822 = vmatpush1.bf16.xpose.msra.mxu0 0
        %823 = vmatprep.subr.bf16.mxu0 0
        %824 = vmatpush1.bf16.xpose.msra.mxu0 0
        %825 = vmatprep.subr.bf16.mxu0 0
        %826 = vmatpush1.bf16.xpose.msra.mxu0 0
        %827 = vmatprep.subr.bf16.mxu0 0
        %828 = vmatpush1.bf16.xpose.msra.mxu0 0
        %829 = vmatprep.subr.bf16.mxu0 0
        %830 = vmatpush1.bf16.xpose.msra.mxu0 0
        %831 = vmatprep.subr.bf16.mxu0 0
        %832 = vmatpush1.bf16.xpose.msra.mxu0 0
        %833 = vmatprep.subr.bf16.mxu0 0
        %834 = vmatpush1.bf16.xpose.msra.mxu0 0
        %835 = vmatprep.subr.bf16.mxu0 0
        %836 = vmatpush1.bf16.xpose.msra.mxu0 0
        %837 = vmatprep.subr.bf16.mxu0 0
        %838 = vmatpush1.bf16.xpose.msra.mxu0 0
        %839 = vmatprep.subr.bf16.mxu0 0
        %840 = vmatpush1.bf16.xpose.msra.mxu0 0
        %841 = vmatprep.subr.bf16.mxu0 0
        %842 = vmatpush1.bf16.xpose.msra.mxu0 0
        %843 = vmatprep.subr.bf16.mxu0 0
        %844 = vmatpush1.bf16.xpose.msra.mxu0 0
        %845 = vmatprep.subr.bf16.mxu0 0
        %846 = vmatpush1.bf16.xpose.msra.mxu0 0
        %847 = vmatprep.subr.bf16.mxu0 0
        %848 = vmatpush1.bf16.xpose.msra.mxu0 0
        %849 = vmatprep.subr.bf16.mxu0 0
        %850 = vmatpush1.bf16.xpose.msra.mxu0 0
        %851 = vmatprep.mubr.bf16.mxu0 0
        %852 = vmatmul.mubr.bf16.gmra.mrb[0].mxu0 %v814
        %v853 = vpop.f32.mrb[0].mxu0
        %v854 = vadd.f32 0.0, %v853
        %v855 = vpop.f32.mrb[0].mxu0
        %v856 = vpop.f32.mrb[0].mxu0
        %v857 = vadd.f32 0.0, %v856
        %v858 = vpop.f32.mrb[0].mxu0
        %859 = vdwg.mxu0
        %v860 = vmul.f32 %v854, 0.17677669
        %v861 = vmul.f32 %v857, 0.17677669
        %v862 = vsel %vm431, %v860, -inf
        %v863 = vsel %vm432, %v861, -inf
        %v864 = vsel %vm488, %v862, -inf
        %865 = vmax.xlane.f32.xlu0 %v864
        %v866 = vpop.xlane.xlu0 %865
        %v867 = vsel %vm488, %v863, -inf
        %868 = vmax.xlane.f32.xlu0 %v867
        %v869 = vpop.xlane.xlu0 %868
        %v870 = vsub.f32 %v862, %v866
        %v871 = vsub.f32 %v863, %v869
        %v872 = vmul.f32 %v870, 1.442695
        %v873 = vpow.pop %v872
        %v874 = vmul.f32 %v871, 1.442695
        %v875 = vpow.pop %v874
        %v876 = vsel %vm488, %v873, 0.0
        %877 = vadd.xlane.f32.xlu0 %v876
        %v878 = vpop.xlane.xlu0 %877
        %v879 = vsel %vm488, %v875, 0.0
        %880 = vadd.xlane.f32.xlu0 %v879
        %v881 = vpop.xlane.xlu0 %880
        %v882 = vrcp.pop %v878
        %v883 = vrcp.pop %v881
        %v884 = vmul.f32 %v873, %v882
        %v885 = vmul.f32 %v875, %v883
        %v886 = vpack.c.bf16 %v885, %v884
        %887 = vrot.lane.b32.xlu0 %v435, 104
        %v888 = vpop.permute.xlu0 %887
        %v891 = vsel %vm488, %v886, 0
        %893 = vmatprep.subr.bf16.mxu0 0
        %894 = vmatpush1.bf16.msra.mxu0 %v888
        %895 = vmatprep.subr.bf16.mxu0 0
        %896 = vmatpush1.bf16.msra.mxu0 0
        %897 = vmatprep.subr.bf16.mxu0 0
        %898 = vmatpush1.bf16.msra.mxu0 0
        %899 = vmatprep.subr.bf16.mxu0 0
        %900 = vmatpush1.bf16.msra.mxu0 0
        %901 = vmatprep.subr.bf16.mxu0 0
        %902 = vmatpush1.bf16.msra.mxu0 0
        %903 = vmatprep.subr.bf16.mxu0 0
        %904 = vmatpush1.bf16.msra.mxu0 0
        %905 = vmatprep.subr.bf16.mxu0 0
        %906 = vmatpush1.bf16.msra.mxu0 0
        %907 = vmatprep.subr.bf16.mxu0 0
        %908 = vmatpush1.bf16.msra.mxu0 0
        %909 = vmatprep.subr.bf16.mxu0 0
        %910 = vmatpush1.bf16.msra.mxu0 0
        %911 = vmatprep.subr.bf16.mxu0 0
        %912 = vmatpush1.bf16.msra.mxu0 0
        %913 = vmatprep.subr.bf16.mxu0 0
        %914 = vmatpush1.bf16.msra.mxu0 0
        %915 = vmatprep.subr.bf16.mxu0 0
        %916 = vmatpush1.bf16.msra.mxu0 0
        %917 = vmatprep.subr.bf16.mxu0 0
        %918 = vmatpush1.bf16.msra.mxu0 0
        %919 = vmatprep.subr.bf16.mxu0 0
        %920 = vmatpush1.bf16.msra.mxu0 0
        %921 = vmatprep.subr.bf16.mxu0 0
        %922 = vmatpush1.bf16.msra.mxu0 0
        %923 = vmatprep.subr.bf16.mxu0 0
        %924 = vmatpush1.bf16.msra.mxu0 0
        %925 = vmatprep.mubr.bf16.mxu0 0
        %926 = vmatmul.mubr.bf16.gmra.mrb[0].mxu0 %v891
        %v927 = vpop.f32.mrb[0].mxu0
        %v928 = vadd.f32 0.0, %v927
        %v929 = vpop.f32.mrb[0].mxu0
        %v930 = vpop.f32.mrb[0].mxu0
        %v931 = vadd.f32 0.0, %v930
        %v932 = vpop.f32.mrb[0].mxu0
        %933 = vdwg.mxu0
        %936 = vrot.lane.b32.xlu0 %v678, 8
        %v937 = vpop.permute.xlu0 %936
        %938 = vrot.lane.b32.xlu0 %v681, 8
        %v939 = vpop.permute.xlu0 %938
        %944 = vrot.lane.b32.xlu0 %v803, 16
        %v945 = vpop.permute.xlu0 %944
        %946 = vrot.lane.b32.xlu0 %v806, 16
        %v947 = vpop.permute.xlu0 %946
        %952 = vrot.lane.b32.xlu0 %v928, 24
        %v953 = vpop.permute.xlu0 %952
        %954 = vrot.lane.b32.xlu0 %v931, 24
        %v955 = vpop.permute.xlu0 %954
        %v958 = vsel %vm436, %v550, %v937
        %v959 = vsel %vm436, %v553, %v939
        %v960 = vsel %vm488, %v958, %v945
        %v961 = vsel %vm488, %v959, %v947
        %vm962 = vcmask 195584
        %v963 = vsel %vm962, %v960, %v953
        %v964 = vsel %vm962, %v961, %v955
        %v965 = vpack.c.bf16 %v964, %v963
        %v966 = vld [vmem:[#allocation7] sm:$0xf]
        %v967 = vld [vmem:[#allocation7 + $0x4] sm:$0xf]
        %v968 = vld [vmem:[#allocation7 + $0x8] sm:$0xf]
        %v969 = vld [vmem:[#allocation7 + $0xc] sm:$0xf]
        %v970 = vld [vmem:[%s3] sm:$0x1]
        %v972 = vlaneseq
        %v973 = vshrl.u32 %v972, 7
        %v974 = vsub.s32 0, %v973
        %v975 = vrot.slane %v970, %v974
        %v981 = vunpack.c.l.b16 %v966
        %v982 = vunpack.c.l.b16 %v967
        %v983 = vunpack.c.l.b16 %v968
        %v984 = vunpack.c.l.b16 %v969
        %v985 = vpack.c.b16 %v982, %v981
        %v986 = vpack.c.b16 %v984, %v983
        %v990 = vsel %vm265, %v965, 0
        %992 = vmatprep.subr.bf16.mxu0 0
        %993 = vmatpush1.bf16.msra.mxu0 %v985
        %994 = vmatprep.subr.bf16.mxu0 0
        %995 = vmatpush1.bf16.msra.mxu0 %v986
        %996 = vmatprep.subr.bf16.mxu0 0
        %997 = vmatpush1.bf16.msra.mxu0 0
        %998 = vmatprep.subr.bf16.mxu0 0
        %999 = vmatpush1.bf16.msra.mxu0 0
        %1000 = vmatprep.subr.bf16.mxu0 0
        %1001 = vmatpush1.bf16.msra.mxu0 0
        %1002 = vmatprep.subr.bf16.mxu0 0
        %1003 = vmatpush1.bf16.msra.mxu0 0
        %1004 = vmatprep.subr.bf16.mxu0 0
        %1005 = vmatpush1.bf16.msra.mxu0 0
        %1006 = vmatprep.subr.bf16.mxu0 0
        %1007 = vmatpush1.bf16.msra.mxu0 0
        %1008 = vmatprep.subr.bf16.mxu0 0
        %1009 = vmatpush1.bf16.msra.mxu0 0
        %1010 = vmatprep.subr.bf16.mxu0 0
        %1011 = vmatpush1.bf16.msra.mxu0 0
        %1012 = vmatprep.subr.bf16.mxu0 0
        %1013 = vmatpush1.bf16.msra.mxu0 0
        %1014 = vmatprep.subr.bf16.mxu0 0
        %1015 = vmatpush1.bf16.msra.mxu0 0
        %1016 = vmatprep.subr.bf16.mxu0 0
        %1017 = vmatpush1.bf16.msra.mxu0 0
        %1018 = vmatprep.subr.bf16.mxu0 0
        %1019 = vmatpush1.bf16.msra.mxu0 0
        %1020 = vmatprep.subr.bf16.mxu0 0
        %1021 = vmatpush1.bf16.msra.mxu0 0
        %1022 = vmatprep.subr.bf16.mxu0 0
        %1023 = vmatpush1.bf16.msra.mxu0 0
        %1024 = vmatprep.mubr.bf16.mxu0 0
        %1025 = vmatmul.mubr.bf16.gmra.mrb[0].mxu0 %v990
        %v1026 = vpop.f32.mrb[0].mxu0
        %v1027 = vadd.f32 %v975, %v1026
        %v1028 = vpop.f32.mrb[0].mxu0
        %v1029 = vpop.f32.mrb[0].mxu0
        %v1030 = vadd.f32 %v975, %v1029
        %v1031 = vpop.f32.mrb[0].mxu0
        %1032 = vdwg.mxu0
        %1033 = vst.msk [vmem:[%s244] sm:$0xff] %vm265, %v1027
        %1034 = vst.msk [vmem:[%s244 + $0x8] sm:$0xff] %vm265, %v1030
        %s1035 = sand.u32 %s119, 1
        %s1036 = scalar_lea.sflag [#allocation4], %s1035
        %s1037 = sand.u32 %s119, 1
        %s1038 = smul.addr %s1037, 16
        %s1039 = scalar_lea.vmem [#allocation8], %s1038
        // Predicated region
        $region49: #{tpu_custom_call.1} parent=35 // pred_check
          %p1040 = pneg %p129
        $region50: #{tpu_custom_call.1} parent=35 // pred_check_branch
          %1042 = sbr.rel (%p1040) target = $region52
        $region51: #{tpu_custom_call.1} parent=35 // pred_region
          %s1044 = ssub.s32 256, 256
          %1045 = vsyncadd %s1036, %s1044
          %s1046 = smul.addr %s22, 2
          %s1047 = smul.addr %s1046, 128
          %s1048 = scalar_lea.hbm %s4, %s1047
          %s1049 = sshll.u32 %s1039, 4
          %s1050 = int_to_ptr.vmem [resolvable:$true] %s1049
          %1055 = dma.vmem_to_hbm [thread:$0]  %s1050, 256, %s1048, %s1036, 128, 128, 8
        $region52: #{tpu_custom_call.1} parent=35 // pred_fallthru
          _
      $region36: #{tpu_custom_call.1} parent=5 // pred_fallthru
        _
      %p1056 = scmp.le.s32.totalorder 2, %s17
      // Predicated region
      $region53: #{tpu_custom_call.1} parent=5 // pred_check
        %p1057 = pneg %p1056
      $region54: #{tpu_custom_call.1} parent=5 // pred_check_branch
        %1059 = sbr.rel (%p1057) target = $region56
      $region55: #{tpu_custom_call.1} parent=5 // pred_region
        %s1060 = ssub.s32 %s17, 2
        // Predicated region
        $region57: #{tpu_custom_call.1} parent=55 // pred_check
          %p1061 = pneg %p135
        $region58: #{tpu_custom_call.1} parent=55 // pred_check_branch
          %1063 = sbr.rel (%p1061) target = $region60
        $region59: #{tpu_custom_call.1} parent=55 // pred_region
          %s1064 = sand.u32 %s120, 1
          %s1065 = scalar_lea.sflag [#allocation4], %s1064
          %s1066 = sand.u32 %s120, 1
          %s1067 = smul.addr %s1066, 16
          %s1068 = scalar_lea.vmem [#allocation8], %s1067
          %1069 = dma.done %s1065, 256
        $region60: #{tpu_custom_call.1} parent=55 // pred_fallthru
          _
      $region56: #{tpu_custom_call.1} parent=5 // pred_fallthru
        _
    $region6: #{tpu_custom_call.1} parent=1 // loop_footer
      %s21 = sadd.s32 1, %s17
    $region7: #{tpu_custom_call.1} parent=1 // loop_footer_branch
      %16 = sbr.rel target = $region3
    $region8: #{tpu_custom_call.1} parent=1 // loop_exit
      _
    %1070 = vsyncpa [#allocation3], 1
    %s1071 = scalar_lea.sflag [#allocation3], 1
    %1072 = vsyncpa %s1071, 1
    %1073 = vsyncpa [#allocation6], 1
    %1074 = vsyncpa [#allocation4], 1
    %s1075 = scalar_lea.sflag [#allocation4], 1
    %1076 = vsyncpa %s1075, 1

</llo_original>
